<compile_context>
chip_gen: v7x
topology: tpu7x:2x2x1
jax: 0.10.0
libtpu: 0.0.40
codegen_flags: <defaults>
</compile_context>

<pallas_src>
import functools
import math

import jax
import jax.numpy as jnp
import numpy as np
from jax.experimental import pallas as pl
from jax.experimental.pallas import tpu as pltpu


def _fused_mlp_kernel(*refs, depth, eps, matmul_dtype):
    """depth x (Linear(no bias) -> BatchNorm1d(train) -> ReLU), fully fused.

    refs = (x, w_0, gamma_0, beta_0, ..., w_{d-1}, gamma_{d-1}, beta_{d-1}, out)
    """
    x_ref = refs[0]
    o_ref = refs[-1]

    act = x_ref[...]
    inv_n = 1.0 / act.shape[0]

    for i in range(depth):
        w_ref, g_ref, b_ref = refs[1 + 3 * i: 4 + 3 * i]

        # MXU matmul: bf16 inputs, f32 accumulation.  The Linear bias is
        # intentionally omitted: train-mode BatchNorm subtracts the batch mean,
        # which cancels any per-feature additive bias exactly.
        h = jnp.dot(act.astype(matmul_dtype),
                    w_ref[...].astype(matmul_dtype),
                    preferred_element_type=jnp.float32)

        # BatchNorm1d (training mode, biased variance), one-pass statistics,
        # folded into a single (1, W) scale/shift so the (N, W) epilogue is
        # just one FMA + ReLU per element (all in f32).
        mean = jnp.sum(h, axis=0, keepdims=True) * inv_n
        mean_sq = jnp.sum(h * h, axis=0, keepdims=True) * inv_n
        var = mean_sq - mean * mean
        scale = jax.lax.rsqrt(var + eps) * g_ref[...]
        shift = b_ref[...] - mean * scale

        act = jnp.maximum(h * scale + shift, 0.0)

    o_ref[...] = act.astype(o_ref.dtype)


def mlp_forward(x, params, *, eps=1e-5, matmul_dtype=jnp.bfloat16):
    """Full MLP forward in one fused pallas_call (activations stay in VMEM)."""
    depth = len(params)
    n = x.shape[0]
    out_w = params[-1]["w"].shape[1]

    flat_inputs = [x]
    for p in params:
        flat_inputs += [p["w"], p["gamma"], p["beta"]]

    kernel = functools.partial(_fused_mlp_kernel, depth=depth, eps=eps,
                               matmul_dtype=matmul_dtype)
    vmem_spec = pl.BlockSpec(memory_space=pltpu.MemorySpace.VMEM)
    return pl.pallas_call(
        kernel,
        out_shape=jax.ShapeDtypeStruct((n, out_w), x.dtype),
        in_specs=[vmem_spec] * len(flat_inputs),
        out_specs=vmem_spec,
    )(*flat_inputs)


def init_mlp_params(key, in_channels, depth, width, *,
                    matmul_dtype=jnp.bfloat16):
    """Parameters mirroring nn.Linear defaults + BatchNorm1d defaults.

    Weights are stored as (in, out) in `matmul_dtype` (bf16) to halve weight
    DMA bytes.  The Linear bias is kept (f32) only so the reference can verify
    that train-mode BatchNorm cancels it — the fused kernel never reads it.
    """
    if isinstance(width, int):
        width = [width] * depth
    assert len(width) == depth
    params = []
    num_feats = in_channels
    for i in range(depth):
        key, k_w, k_b = jax.random.split(key, 3)
        bound = 1.0 / math.sqrt(num_feats)
        w = jax.random.uniform(k_w, (num_feats, width[i]), jnp.float32,
                               minval=-bound, maxval=bound)
        b = jax.random.uniform(k_b, (1, width[i]), jnp.float32,
                               minval=-bound, maxval=bound)
        params.append(dict(
            w=w.astype(matmul_dtype),
            b=b,                                           # reference only
            gamma=jnp.ones((1, width[i]), jnp.float32),    # BN default weight
            beta=jnp.zeros((1, width[i]), jnp.float32),    # BN default bias
        ))
        num_feats = width[i]
    return params


def mlp_forward_ref(x, params, eps=1e-5, matmul_dtype=jnp.bfloat16):
    """Pure-JAX reference following the PyTorch module literally:
    Linear (WITH bias) -> BatchNorm1d(train, biased var) -> ReLU per layer."""
    for p in params:
        h = jnp.dot(x.astype(matmul_dtype), p["w"].astype(matmul_dtype),
                    preferred_element_type=jnp.float32)
        h = h + p["b"]
        mean = h.mean(axis=0, keepdims=True)
        var = ((h - mean) ** 2).mean(axis=0, keepdims=True)
        h = (h - mean) / jnp.sqrt(var + eps) * p["gamma"] + p["beta"]
        x = jnp.maximum(h, 0.0)
    return x


if __name__ == "__main__":
    # Small but TPU-friendly shapes: batch multiple of 8, widths multiple of
    # 128 (lane-dense stores, decent MXU fill).
    N = 128
    in_channels = 32
    depth = 3
    width = 128

    key = jax.random.PRNGKey(0)
    k_x, k_p = jax.random.split(key)
    x = jax.random.normal(k_x, (N, in_channels), jnp.float32)
    params = init_mlp_params(k_p, in_channels, depth, width)

    out = jax.block_until_ready(mlp_forward(x, params))
    ref = mlp_forward_ref(x, params)

    # Both paths use identical bf16 matmul inputs with f32 accumulation; the
    # remaining differences (bias cancellation, one-pass vs two-pass variance,
    # folded affine) are at f32-rounding level on O(1) normalized outputs.
    np.testing.assert_allclose(np.asarray(out), np.asarray(ref),
                               rtol=1e-3, atol=1e-3)

    assert out.shape == (N, width)
    print("KERNEL_OK")
</pallas_src>

<mosaic_0001>
module attributes {stable_mosaic.version = 11 : i64} {
  func.func @_fused_mlp_kernel(%arg0: memref<128x32xf32, #tpu.memory_space<vmem>>, %arg1: memref<32x128xbf16, #tpu.memory_space<vmem>>, %arg2: memref<1x128xf32, #tpu.memory_space<vmem>>, %arg3: memref<1x128xf32, #tpu.memory_space<vmem>>, %arg4: memref<128x128xbf16, #tpu.memory_space<vmem>>, %arg5: memref<1x128xf32, #tpu.memory_space<vmem>>, %arg6: memref<1x128xf32, #tpu.memory_space<vmem>>, %arg7: memref<128x128xbf16, #tpu.memory_space<vmem>>, %arg8: memref<1x128xf32, #tpu.memory_space<vmem>>, %arg9: memref<1x128xf32, #tpu.memory_space<vmem>>, %arg10: memref<128x128xf32, #tpu.memory_space<vmem>>) attributes {dimension_semantics = [], scalar_prefetch = 0 : i64, scratch_operands = 0 : i64, tpu.core_type = #tpu.core_type<tc>} {
    %c0 = arith.constant 0 : index
    %c0_0 = arith.constant 0 : index
    %0 = vector.load %arg0[%c0, %c0_0] : memref<128x32xf32, #tpu.memory_space<vmem>>, vector<128x32xf32>
    %1 = arith.truncf %0 : vector<128x32xf32> to vector<128x32xbf16>
    %c0_1 = arith.constant 0 : index
    %c0_2 = arith.constant 0 : index
    %2 = vector.load %arg1[%c0_1, %c0_2] : memref<32x128xbf16, #tpu.memory_space<vmem>>, vector<32x128xbf16>
    %cst = arith.constant dense<0.000000e+00> : vector<128x128xf32>
    %3 = tpu.matmul %1, %2, %cst {dimension_numbers = #tpu.dot_dimension_numbers<[1], [0], [0], [1], [0, 0, 1, 1], [], []>} : vector<128x32xbf16>, vector<32x128xbf16>, vector<128x128xf32> -> vector<128x128xf32>
    %cst_3 = arith.constant dense<0.000000e+00> : vector<128xf32>
    %4 = vector.multi_reduction <add>, %3, %cst_3 [0] : vector<128x128xf32> to vector<128xf32>
    %5 = vector.shape_cast %4 : vector<128xf32> to vector<1x128xf32>
    %cst_4 = arith.constant 7.812500e-03 : f32
    %6 = vector.broadcast %cst_4 : f32 to vector<1x128xf32>
    %7 = arith.mulf %5, %6 : vector<1x128xf32>
    %8 = arith.mulf %3, %3 : vector<128x128xf32>
    %cst_5 = arith.constant dense<0.000000e+00> : vector<128xf32>
    %9 = vector.multi_reduction <add>, %8, %cst_5 [0] : vector<128x128xf32> to vector<128xf32>
    %10 = vector.shape_cast %9 : vector<128xf32> to vector<1x128xf32>
    %cst_6 = arith.constant 7.812500e-03 : f32
    %11 = vector.broadcast %cst_6 : f32 to vector<1x128xf32>
    %12 = arith.mulf %10, %11 : vector<1x128xf32>
    %13 = arith.mulf %7, %7 : vector<1x128xf32>
    %14 = arith.subf %12, %13 : vector<1x128xf32>
    %cst_7 = arith.constant 9.99999974E-6 : f32
    %15 = vector.broadcast %cst_7 : f32 to vector<1x128xf32>
    %16 = arith.addf %14, %15 : vector<1x128xf32>
    %17 = math.rsqrt %16 : vector<1x128xf32>
    %c0_8 = arith.constant 0 : index
    %c0_9 = arith.constant 0 : index
    %18 = vector.load %arg2[%c0_8, %c0_9] : memref<1x128xf32, #tpu.memory_space<vmem>>, vector<1x128xf32>
    %19 = arith.mulf %17, %18 : vector<1x128xf32>
    %c0_10 = arith.constant 0 : index
    %c0_11 = arith.constant 0 : index
    %20 = vector.load %arg3[%c0_10, %c0_11] : memref<1x128xf32, #tpu.memory_space<vmem>>, vector<1x128xf32>
    %21 = arith.mulf %7, %19 : vector<1x128xf32>
    %22 = arith.subf %20, %21 : vector<1x128xf32>
    %23 = vector.broadcast %19 : vector<1x128xf32> to vector<128x128xf32>
    %24 = arith.mulf %3, %23 : vector<128x128xf32>
    %25 = vector.broadcast %22 : vector<1x128xf32> to vector<128x128xf32>
    %26 = arith.addf %24, %25 : vector<128x128xf32>
    %cst_12 = arith.constant 0.000000e+00 : f32
    %27 = vector.broadcast %cst_12 : f32 to vector<128x128xf32>
    %28 = arith.maximumf %26, %27 : vector<128x128xf32>
    %29 = arith.truncf %28 : vector<128x128xf32> to vector<128x128xbf16>
    %c0_13 = arith.constant 0 : index
    %c0_14 = arith.constant 0 : index
    %30 = vector.load %arg4[%c0_13, %c0_14] : memref<128x128xbf16, #tpu.memory_space<vmem>>, vector<128x128xbf16>
    %cst_15 = arith.constant dense<0.000000e+00> : vector<128x128xf32>
    %31 = tpu.matmul %29, %30, %cst_15 {dimension_numbers = #tpu.dot_dimension_numbers<[1], [0], [0], [1], [0, 0, 1, 1], [], []>} : vector<128x128xbf16>, vector<128x128xbf16>, vector<128x128xf32> -> vector<128x128xf32>
    %cst_16 = arith.constant dense<0.000000e+00> : vector<128xf32>
    %32 = vector.multi_reduction <add>, %31, %cst_16 [0] : vector<128x128xf32> to vector<128xf32>
    %33 = vector.shape_cast %32 : vector<128xf32> to vector<1x128xf32>
    %cst_17 = arith.constant 7.812500e-03 : f32
    %34 = vector.broadcast %cst_17 : f32 to vector<1x128xf32>
    %35 = arith.mulf %33, %34 : vector<1x128xf32>
    %36 = arith.mulf %31, %31 : vector<128x128xf32>
    %cst_18 = arith.constant dense<0.000000e+00> : vector<128xf32>
    %37 = vector.multi_reduction <add>, %36, %cst_18 [0] : vector<128x128xf32> to vector<128xf32>
    %38 = vector.shape_cast %37 : vector<128xf32> to vector<1x128xf32>
    %cst_19 = arith.constant 7.812500e-03 : f32
    %39 = vector.broadcast %cst_19 : f32 to vector<1x128xf32>
    %40 = arith.mulf %38, %39 : vector<1x128xf32>
    %41 = arith.mulf %35, %35 : vector<1x128xf32>
    %42 = arith.subf %40, %41 : vector<1x128xf32>
    %cst_20 = arith.constant 9.99999974E-6 : f32
    %43 = vector.broadcast %cst_20 : f32 to vector<1x128xf32>
    %44 = arith.addf %42, %43 : vector<1x128xf32>
    %45 = math.rsqrt %44 : vector<1x128xf32>
    %c0_21 = arith.constant 0 : index
    %c0_22 = arith.constant 0 : index
    %46 = vector.load %arg5[%c0_21, %c0_22] : memref<1x128xf32, #tpu.memory_space<vmem>>, vector<1x128xf32>
    %47 = arith.mulf %45, %46 : vector<1x128xf32>
    %c0_23 = arith.constant 0 : index
    %c0_24 = arith.constant 0 : index
    %48 = vector.load %arg6[%c0_23, %c0_24] : memref<1x128xf32, #tpu.memory_space<vmem>>, vector<1x128xf32>
    %49 = arith.mulf %35, %47 : vector<1x128xf32>
    %50 = arith.subf %48, %49 : vector<1x128xf32>
    %51 = vector.broadcast %47 : vector<1x128xf32> to vector<128x128xf32>
    %52 = arith.mulf %31, %51 : vector<128x128xf32>
    %53 = vector.broadcast %50 : vector<1x128xf32> to vector<128x128xf32>
    %54 = arith.addf %52, %53 : vector<128x128xf32>
    %cst_25 = arith.constant 0.000000e+00 : f32
    %55 = vector.broadcast %cst_25 : f32 to vector<128x128xf32>
    %56 = arith.maximumf %54, %55 : vector<128x128xf32>
    %57 = arith.truncf %56 : vector<128x128xf32> to vector<128x128xbf16>
    %c0_26 = arith.constant 0 : index
    %c0_27 = arith.constant 0 : index
    %58 = vector.load %arg7[%c0_26, %c0_27] : memref<128x128xbf16, #tpu.memory_space<vmem>>, vector<128x128xbf16>
    %cst_28 = arith.constant dense<0.000000e+00> : vector<128x128xf32>
    %59 = tpu.matmul %57, %58, %cst_28 {dimension_numbers = #tpu.dot_dimension_numbers<[1], [0], [0], [1], [0, 0, 1, 1], [], []>} : vector<128x128xbf16>, vector<128x128xbf16>, vector<128x128xf32> -> vector<128x128xf32>
    %cst_29 = arith.constant dense<0.000000e+00> : vector<128xf32>
    %60 = vector.multi_reduction <add>, %59, %cst_29 [0] : vector<128x128xf32> to vector<128xf32>
    %61 = vector.shape_cast %60 : vector<128xf32> to vector<1x128xf32>
    %cst_30 = arith.constant 7.812500e-03 : f32
    %62 = vector.broadcast %cst_30 : f32 to vector<1x128xf32>
    %63 = arith.mulf %61, %62 : vector<1x128xf32>
    %64 = arith.mulf %59, %59 : vector<128x128xf32>
    %cst_31 = arith.constant dense<0.000000e+00> : vector<128xf32>
    %65 = vector.multi_reduction <add>, %64, %cst_31 [0] : vector<128x128xf32> to vector<128xf32>
    %66 = vector.shape_cast %65 : vector<128xf32> to vector<1x128xf32>
    %cst_32 = arith.constant 7.812500e-03 : f32
    %67 = vector.broadcast %cst_32 : f32 to vector<1x128xf32>
    %68 = arith.mulf %66, %67 : vector<1x128xf32>
    %69 = arith.mulf %63, %63 : vector<1x128xf32>
    %70 = arith.subf %68, %69 : vector<1x128xf32>
    %cst_33 = arith.constant 9.99999974E-6 : f32
    %71 = vector.broadcast %cst_33 : f32 to vector<1x128xf32>
    %72 = arith.addf %70, %71 : vector<1x128xf32>
    %73 = math.rsqrt %72 : vector<1x128xf32>
    %c0_34 = arith.constant 0 : index
    %c0_35 = arith.constant 0 : index
    %74 = vector.load %arg8[%c0_34, %c0_35] : memref<1x128xf32, #tpu.memory_space<vmem>>, vector<1x128xf32>
    %75 = arith.mulf %73, %74 : vector<1x128xf32>
    %c0_36 = arith.constant 0 : index
    %c0_37 = arith.constant 0 : index
    %76 = vector.load %arg9[%c0_36, %c0_37] : memref<1x128xf32, #tpu.memory_space<vmem>>, vector<1x128xf32>
    %77 = arith.mulf %63, %75 : vector<1x128xf32>
    %78 = arith.subf %76, %77 : vector<1x128xf32>
    %79 = vector.broadcast %75 : vector<1x128xf32> to vector<128x128xf32>
    %80 = arith.mulf %59, %79 : vector<128x128xf32>
    %81 = vector.broadcast %78 : vector<1x128xf32> to vector<128x128xf32>
    %82 = arith.addf %80, %81 : vector<128x128xf32>
    %cst_38 = arith.constant 0.000000e+00 : f32
    %83 = vector.broadcast %cst_38 : f32 to vector<128x128xf32>
    %84 = arith.maximumf %82, %83 : vector<128x128xf32>
    %c0_39 = arith.constant 0 : index
    %c0_40 = arith.constant 0 : index
    %85 = vector.load %arg10[%c0_39, %c0_40] : memref<128x128xf32, #tpu.memory_space<vmem>>, vector<128x128xf32>
    tpu.vector_store %arg10[%c0_39, %c0_40], %84 {strides = array<i32>} : memref<128x128xf32, #tpu.memory_space<vmem>>, vector<128x128xf32>,
    return
  }
}

</mosaic_0001>

<llo_original>
// kernel: tpu_custom_call.1
$region0: #{tpu_custom_call.1}
  #allocation0 [shape = 'u32[]', space=smem, size = 0x4, offset = 0x4, fixed_abs, tag = 'smem constant byte address 0x4 - core index']
  #allocation1 [shape = 'u32[144,128]{1,0:T(1,128)}', space=vmem, size = 0x12000, scoped, tag = 'internal scratch']
  %s0 = inlined_call_operand.vmem [shape: f32[128,32], index: 0, kind: input, shape index: {}]
  %s1 = inlined_call_operand.vmem [shape: bf16[32,128], index: 1, kind: input, shape index: {}]
  %s2 = inlined_call_operand.vmem [shape: f32[1,128], index: 2, kind: input, shape index: {}]
  %s3 = inlined_call_operand.vmem [shape: f32[1,128], index: 3, kind: input, shape index: {}]
  %s4 = inlined_call_operand.vmem [shape: bf16[128,128], index: 4, kind: input, shape index: {}]
  %s5 = inlined_call_operand.vmem [shape: f32[1,128], index: 5, kind: input, shape index: {}]
  %s6 = inlined_call_operand.vmem [shape: f32[1,128], index: 6, kind: input, shape index: {}]
  %s7 = inlined_call_operand.vmem [shape: bf16[128,128], index: 7, kind: input, shape index: {}]
  %s8 = inlined_call_operand.vmem [shape: f32[1,128], index: 8, kind: input, shape index: {}]
  %s9 = inlined_call_operand.vmem [shape: f32[1,128], index: 9, kind: input, shape index: {}]
  %s10 = inlined_call_operand.hbm [shape: f32[128,128], index: 10, kind: output, shape index: {}]
  %s11 = sld [smem:[#allocation0]]
  $region50: #{tpu_custom_call.1} parent=0
    _
  %s13 = ssub.s32 1, %s11
  %s14 = scalar_select 0, %s13, %s11
  $region1: #{tpu_custom_call.1} parent=0
    #allocation2 [shape = 'u8[65536]{0}', space=vmem, size = 0x10000, scoped, tag = 'output window, operand 0, single buffered']
    #allocation3 [shape = 's32[1]{0}', space=sflag, size = 0x4, scoped, tag = 'scoped memory for tpu_custom_call.1']
    %15 = vsyncpa [#allocation3], 0
    // Predicated region
    $region2: #{tpu_custom_call.1} parent=1 // pred_check
      _
    $region3: #{tpu_custom_call.1} parent=1 // pred_check_branch
      %17 = sbr.rel (0) target = $region5
    $region4: #{tpu_custom_call.1} parent=1 // pred_region
      _
    $region5: #{tpu_custom_call.1} parent=1 // pred_fallthru
      _
    // Predicated region
    $region6: #{tpu_custom_call.1} parent=1 // pred_check
      _
    $region7: #{tpu_custom_call.1} parent=1 // pred_check_branch
      %19 = sbr.rel (0) target = $region9
    $region8: #{tpu_custom_call.1} parent=1 // pred_region
      _
    $region9: #{tpu_custom_call.1} parent=1 // pred_fallthru
      _
    // Predicated region
    $region10: #{tpu_custom_call.1} parent=1 // pred_check
      _
    $region11: #{tpu_custom_call.1} parent=1 // pred_check_branch
      %21 = sbr.rel (0) target = $region13
    $region12: #{tpu_custom_call.1} parent=1 // pred_region
      _
    $region13: #{tpu_custom_call.1} parent=1 // pred_fallthru
      _
    // Predicated region
    $region14: #{tpu_custom_call.1} parent=1 // pred_check
      _
    $region15: #{tpu_custom_call.1} parent=1 // pred_check_branch
      %23 = sbr.rel (0) target = $region17
    $region16: #{tpu_custom_call.1} parent=1 // pred_region
      _
    $region17: #{tpu_custom_call.1} parent=1 // pred_fallthru
      _
    // Predicated region
    $region18: #{tpu_custom_call.1} parent=1 // pred_check
      _
    $region19: #{tpu_custom_call.1} parent=1 // pred_check_branch
      %25 = sbr.rel (0) target = $region21
    $region20: #{tpu_custom_call.1} parent=1 // pred_region
      _
    $region21: #{tpu_custom_call.1} parent=1 // pred_fallthru
      _
    // Predicated region
    $region22: #{tpu_custom_call.1} parent=1 // pred_check
      _
    $region23: #{tpu_custom_call.1} parent=1 // pred_check_branch
      %27 = sbr.rel (0) target = $region25
    $region24: #{tpu_custom_call.1} parent=1 // pred_region
      _
    $region25: #{tpu_custom_call.1} parent=1 // pred_fallthru
      _
    // Predicated region
    $region26: #{tpu_custom_call.1} parent=1 // pred_check
      _
    $region27: #{tpu_custom_call.1} parent=1 // pred_check_branch
      %29 = sbr.rel (0) target = $region29
    $region28: #{tpu_custom_call.1} parent=1 // pred_region
      _
    $region29: #{tpu_custom_call.1} parent=1 // pred_fallthru
      _
    // Predicated region
    $region30: #{tpu_custom_call.1} parent=1 // pred_check
      _
    $region31: #{tpu_custom_call.1} parent=1 // pred_check_branch
      %31 = sbr.rel (0) target = $region33
    $region32: #{tpu_custom_call.1} parent=1 // pred_region
      _
    $region33: #{tpu_custom_call.1} parent=1 // pred_fallthru
      _
    // Predicated region
    $region34: #{tpu_custom_call.1} parent=1 // pred_check
      _
    $region35: #{tpu_custom_call.1} parent=1 // pred_check_branch
      %33 = sbr.rel (0) target = $region37
    $region36: #{tpu_custom_call.1} parent=1 // pred_region
      _
    $region37: #{tpu_custom_call.1} parent=1 // pred_fallthru
      _
    // Predicated region
    $region38: #{tpu_custom_call.1} parent=1 // pred_check
      _
    $region39: #{tpu_custom_call.1} parent=1 // pred_check_branch
      %35 = sbr.rel (0) target = $region41
    $region40: #{tpu_custom_call.1} parent=1 // pred_region
      _
    $region41: #{tpu_custom_call.1} parent=1 // pred_fallthru
      _
    %v37 = vld [vmem:[%s0] sm:$0xff]
    %v38 = vld [vmem:[%s0 + $0x8] sm:$0xff]
    %v39 = vld [vmem:[%s0 + $0x10] sm:$0xff]
    %v40 = vld [vmem:[%s0 + $0x18] sm:$0xff]
    %v41 = vld [vmem:[%s0 + $0x20] sm:$0xff]
    %v42 = vld [vmem:[%s0 + $0x28] sm:$0xff]
    %v43 = vld [vmem:[%s0 + $0x30] sm:$0xff]
    %v44 = vld [vmem:[%s0 + $0x38] sm:$0xff]
    %v45 = vld [vmem:[%s0 + $0x40] sm:$0xff]
    %v46 = vld [vmem:[%s0 + $0x48] sm:$0xff]
    %v47 = vld [vmem:[%s0 + $0x50] sm:$0xff]
    %v48 = vld [vmem:[%s0 + $0x58] sm:$0xff]
    %v49 = vld [vmem:[%s0 + $0x60] sm:$0xff]
    %v50 = vld [vmem:[%s0 + $0x68] sm:$0xff]
    %v51 = vld [vmem:[%s0 + $0x70] sm:$0xff]
    %v52 = vld [vmem:[%s0 + $0x78] sm:$0xff]
    %v53 = vpack.c.bf16 %v38, %v37
    %v54 = vpack.c.bf16 %v40, %v39
    %v55 = vpack.c.bf16 %v42, %v41
    %v56 = vpack.c.bf16 %v44, %v43
    %v57 = vpack.c.bf16 %v46, %v45
    %v58 = vpack.c.bf16 %v48, %v47
    %v59 = vpack.c.bf16 %v50, %v49
    %v60 = vpack.c.bf16 %v52, %v51
    %v61 = vld [vmem:[%s1] sm:$0xf]
    %v62 = vld [vmem:[%s1 + $0x4] sm:$0xf]
    %v63 = vld [vmem:[%s1 + $0x8] sm:$0xf]
    %v64 = vld [vmem:[%s1 + $0xc] sm:$0xf]
    %v69 = vunpack.c.l.b16 %v61
    %v70 = vunpack.c.l.b16 %v62
    %v71 = vunpack.c.l.b16 %v63
    %v72 = vunpack.c.l.b16 %v64
    %v73 = vpack.c.b16 %v70, %v69
    %v74 = vpack.c.b16 %v72, %v71
    %vm77 = vcmask 261120
    %v79 = vsel %vm77, %v53, 0
    %v82 = vsel %vm77, %v54, 0
    %v85 = vsel %vm77, %v55, 0
    %v88 = vsel %vm77, %v56, 0
    %v91 = vsel %vm77, %v57, 0
    %v94 = vsel %vm77, %v58, 0
    %v97 = vsel %vm77, %v59, 0
    %v100 = vsel %vm77, %v60, 0
    %102 = vmatprep.subr.bf16.mxu0 0
    %103 = vmatpush1.bf16.msra.mxu0 %v73
    %104 = vmatprep.subr.bf16.mxu0 0
    %105 = vmatpush1.bf16.msra.mxu0 %v74
    %106 = vmatprep.subr.bf16.mxu0 0
    %107 = vmatpush1.bf16.msra.mxu0 0
    %108 = vmatprep.subr.bf16.mxu0 0
    %109 = vmatpush1.bf16.msra.mxu0 0
    %110 = vmatprep.subr.bf16.mxu0 0
    %111 = vmatpush1.bf16.msra.mxu0 0
    %112 = vmatprep.subr.bf16.mxu0 0
    %113 = vmatpush1.bf16.msra.mxu0 0
    %114 = vmatprep.subr.bf16.mxu0 0
    %115 = vmatpush1.bf16.msra.mxu0 0
    %116 = vmatprep.subr.bf16.mxu0 0
    %117 = vmatpush1.bf16.msra.mxu0 0
    %118 = vmatprep.subr.bf16.mxu0 0
    %119 = vmatpush1.bf16.msra.mxu0 0
    %120 = vmatprep.subr.bf16.mxu0 0
    %121 = vmatpush1.bf16.msra.mxu0 0
    %122 = vmatprep.subr.bf16.mxu0 0
    %123 = vmatpush1.bf16.msra.mxu0 0
    %124 = vmatprep.subr.bf16.mxu0 0
    %125 = vmatpush1.bf16.msra.mxu0 0
    %126 = vmatprep.subr.bf16.mxu0 0
    %127 = vmatpush1.bf16.msra.mxu0 0
    %128 = vmatprep.subr.bf16.mxu0 0
    %129 = vmatpush1.bf16.msra.mxu0 0
    %130 = vmatprep.subr.bf16.mxu0 0
    %131 = vmatpush1.bf16.msra.mxu0 0
    %132 = vmatprep.subr.bf16.mxu0 0
    %133 = vmatpush1.bf16.msra.mxu0 0
    %134 = vmatprep.mubr.bf16.mxu0 0
    %135 = vmatmul.mubr.bf16.gmra.mrb[0].mxu0 %v79
    %v136 = vpop.f32.mrb[0].mxu0
    %v137 = vadd.f32 0.0, %v136
    %v138 = vpop.f32.mrb[0].mxu0
    %v139 = vpop.f32.mrb[0].mxu0
    %v140 = vadd.f32 0.0, %v139
    %v141 = vpop.f32.mrb[0].mxu0
    %142 = vmatprep.mubr.bf16.mxu0 0
    %143 = vmatmul.mubr.bf16.gmra.mrb[0].mxu0 %v82
    %v144 = vpop.f32.mrb[0].mxu0
    %v145 = vadd.f32 0.0, %v144
    %v146 = vpop.f32.mrb[0].mxu0
    %v147 = vpop.f32.mrb[0].mxu0
    %v148 = vadd.f32 0.0, %v147
    %v149 = vpop.f32.mrb[0].mxu0
    %150 = vmatprep.mubr.bf16.mxu0 0
    %151 = vmatmul.mubr.bf16.gmra.mrb[0].mxu0 %v85
    %v152 = vpop.f32.mrb[0].mxu0
    %v153 = vadd.f32 0.0, %v152
    %v154 = vpop.f32.mrb[0].mxu0
    %v155 = vpop.f32.mrb[0].mxu0
    %v156 = vadd.f32 0.0, %v155
    %v157 = vpop.f32.mrb[0].mxu0
    %158 = vmatprep.mubr.bf16.mxu0 0
    %159 = vmatmul.mubr.bf16.gmra.mrb[0].mxu0 %v88
    %v160 = vpop.f32.mrb[0].mxu0
    %v161 = vadd.f32 0.0, %v160
    %v162 = vpop.f32.mrb[0].mxu0
    %v163 = vpop.f32.mrb[0].mxu0
    %v164 = vadd.f32 0.0, %v163
    %v165 = vpop.f32.mrb[0].mxu0
    %166 = vmatprep.mubr.bf16.mxu0 0
    %167 = vmatmul.mubr.bf16.gmra.mrb[0].mxu0 %v91
    %v168 = vpop.f32.mrb[0].mxu0
    %v169 = vadd.f32 0.0, %v168
    %v170 = vpop.f32.mrb[0].mxu0
    %v171 = vpop.f32.mrb[0].mxu0
    %v172 = vadd.f32 0.0, %v171
    %v173 = vpop.f32.mrb[0].mxu0
    %174 = vmatprep.mubr.bf16.mxu0 0
    %175 = vmatmul.mubr.bf16.gmra.mrb[0].mxu0 %v94
    %v176 = vpop.f32.mrb[0].mxu0
    %v177 = vadd.f32 0.0, %v176
    %v178 = vpop.f32.mrb[0].mxu0
    %v179 = vpop.f32.mrb[0].mxu0
    %v180 = vadd.f32 0.0, %v179
    %v181 = vpop.f32.mrb[0].mxu0
    %182 = vmatprep.mubr.bf16.mxu0 0
    %183 = vmatmul.mubr.bf16.gmra.mrb[0].mxu0 %v97
    %v184 = vpop.f32.mrb[0].mxu0
    %v185 = vadd.f32 0.0, %v184
    %v186 = vpop.f32.mrb[0].mxu0
    %v187 = vpop.f32.mrb[0].mxu0
    %v188 = vadd.f32 0.0, %v187
    %v189 = vpop.f32.mrb[0].mxu0
    %190 = vmatprep.mubr.bf16.mxu0 0
    %191 = vmatmul.mubr.bf16.gmra.mrb[0].mxu0 %v100
    %v192 = vpop.f32.mrb[0].mxu0
    %v193 = vadd.f32 0.0, %v192
    %v194 = vpop.f32.mrb[0].mxu0
    %v195 = vpop.f32.mrb[0].mxu0
    %v196 = vadd.f32 0.0, %v195
    %v197 = vpop.f32.mrb[0].mxu0
    %198 = vdwg.mxu0
    %v199 = vadd.f32 %v137, %v140
    %v200 = vadd.f32 %v199, %v145
    %v201 = vadd.f32 %v200, %v148
    %v202 = vadd.f32 %v201, %v153
    %v203 = vadd.f32 %v202, %v156
    %v204 = vadd.f32 %v203, %v161
    %v205 = vadd.f32 %v204, %v164
    %v206 = vadd.f32 %v205, %v169
    %v207 = vadd.f32 %v206, %v172
    %v208 = vadd.f32 %v207, %v177
    %v209 = vadd.f32 %v208, %v180
    %v210 = vadd.f32 %v209, %v185
    %v211 = vadd.f32 %v210, %v188
    %v212 = vadd.f32 %v211, %v193
    %v213 = vadd.f32 %v212, %v196
    %v214 = vrot.slane %v213, 4
    %v215 = vadd.f32 %v213, %v214
    %v216 = vrot.slane %v215, 2
    %v217 = vadd.f32 %v215, %v216
    %v218 = vrot.slane %v217, 1
    %v219 = vadd.f32 %v217, %v218
    %v220 = vmul.f32 %v219, 0.0078125
    %v221 = vmul.f32 %v137, %v137
    %v222 = vmul.f32 %v140, %v140
    %v223 = vmul.f32 %v145, %v145
    %v224 = vmul.f32 %v148, %v148
    %v225 = vmul.f32 %v153, %v153
    %v226 = vmul.f32 %v156, %v156
    %v227 = vmul.f32 %v161, %v161
    %v228 = vmul.f32 %v164, %v164
    %v229 = vmul.f32 %v169, %v169
    %v230 = vmul.f32 %v172, %v172
    %v231 = vmul.f32 %v177, %v177
    %v232 = vmul.f32 %v180, %v180
    %v233 = vmul.f32 %v185, %v185
    %v234 = vmul.f32 %v188, %v188
    %v235 = vmul.f32 %v193, %v193
    %v236 = vmul.f32 %v196, %v196
    %v237 = vadd.f32 %v221, %v222
    %v238 = vadd.f32 %v237, %v223
    %v239 = vadd.f32 %v238, %v224
    %v240 = vadd.f32 %v239, %v225
    %v241 = vadd.f32 %v240, %v226
    %v242 = vadd.f32 %v241, %v227
    %v243 = vadd.f32 %v242, %v228
    %v244 = vadd.f32 %v243, %v229
    %v245 = vadd.f32 %v244, %v230
    %v246 = vadd.f32 %v245, %v231
    %v247 = vadd.f32 %v246, %v232
    %v248 = vadd.f32 %v247, %v233
    %v249 = vadd.f32 %v248, %v234
    %v250 = vadd.f32 %v249, %v235
    %v251 = vadd.f32 %v250, %v236
    %v252 = vrot.slane %v251, 4
    %v253 = vadd.f32 %v251, %v252
    %v254 = vrot.slane %v253, 2
    %v255 = vadd.f32 %v253, %v254
    %v256 = vrot.slane %v255, 1
    %v257 = vadd.f32 %v255, %v256
    %v258 = vmul.f32 %v257, 0.0078125
    %v259 = vmul.f32 %v220, %v220
    %v260 = vsub.f32 %v258, %v259
    %v261 = vadd.f32 %v260, 1e-05
    %v262 = vrsqrt.pop %v261
    %v263 = vld [vmem:[%s2] sm:$0x1]
    %v264 = vmul.f32 %v262, %v263
    %v265 = vld [vmem:[%s3] sm:$0x1]
    %v266 = vmul.f32 %v220, %v264
    %v267 = vsub.f32 %v265, %v266
    %v268 = vlaneseq
    %v269 = vshrl.u32 %v268, 7
    %v270 = vsub.s32 0, %v269
    %v271 = vrot.slane %v264, %v270
    %v272 = vmul.f32 %v137, %v271
    %v273 = vmul.f32 %v140, %v271
    %v274 = vmul.f32 %v145, %v271
    %v275 = vmul.f32 %v148, %v271
    %v276 = vmul.f32 %v153, %v271
    %v277 = vmul.f32 %v156, %v271
    %v278 = vmul.f32 %v161, %v271
    %v279 = vmul.f32 %v164, %v271
    %v280 = vmul.f32 %v169, %v271
    %v281 = vmul.f32 %v172, %v271
    %v282 = vmul.f32 %v177, %v271
    %v283 = vmul.f32 %v180, %v271
    %v284 = vmul.f32 %v185, %v271
    %v285 = vmul.f32 %v188, %v271
    %v286 = vmul.f32 %v193, %v271
    %v287 = vmul.f32 %v196, %v271
    %v289 = vlaneseq
    %v290 = vshrl.u32 %v289, 7
    %v291 = vsub.s32 0, %v290
    %v292 = vrot.slane %v267, %v291
    %v294 = vadd.f32 %v272, %v292
    %v295 = vadd.f32 %v273, %v292
    %v296 = vadd.f32 %v274, %v292
    %v297 = vadd.f32 %v275, %v292
    %v298 = vadd.f32 %v276, %v292
    %v299 = vadd.f32 %v277, %v292
    %v300 = vadd.f32 %v278, %v292
    %v301 = vadd.f32 %v279, %v292
    %v302 = vadd.f32 %v280, %v292
    %v303 = vadd.f32 %v281, %v292
    %v304 = vadd.f32 %v282, %v292
    %v305 = vadd.f32 %v283, %v292
    %v306 = vadd.f32 %v284, %v292
    %v307 = vadd.f32 %v285, %v292
    %v308 = vadd.f32 %v286, %v292
    %v309 = vadd.f32 %v287, %v292
    %v310 = vmax.f32 %v294, 0.0
    %v311 = vmax.f32 %v295, 0.0
    %v312 = vmax.f32 %v296, 0.0
    %v313 = vmax.f32 %v297, 0.0
    %v314 = vmax.f32 %v298, 0.0
    %v315 = vmax.f32 %v299, 0.0
    %v316 = vmax.f32 %v300, 0.0
    %v317 = vmax.f32 %v301, 0.0
    %v318 = vmax.f32 %v302, 0.0
    %v319 = vmax.f32 %v303, 0.0
    %v320 = vmax.f32 %v304, 0.0
    %v321 = vmax.f32 %v305, 0.0
    %v322 = vmax.f32 %v306, 0.0
    %v323 = vmax.f32 %v307, 0.0
    %v324 = vmax.f32 %v308, 0.0
    %v325 = vmax.f32 %v309, 0.0
    %v326 = vpack.c.bf16 %v311, %v310
    %v327 = vpack.c.bf16 %v313, %v312
    %v328 = vpack.c.bf16 %v315, %v314
    %v329 = vpack.c.bf16 %v317, %v316
    %v330 = vpack.c.bf16 %v319, %v318
    %v331 = vpack.c.bf16 %v321, %v320
    %v332 = vpack.c.bf16 %v323, %v322
    %v333 = vpack.c.bf16 %v325, %v324
    %v334 = vld [vmem:[%s4] sm:$0xf]
    %v335 = vld [vmem:[%s4 + $0x4] sm:$0xf]
    %v336 = vld [vmem:[%s4 + $0x8] sm:$0xf]
    %v337 = vld [vmem:[%s4 + $0xc] sm:$0xf]
    %v338 = vld [vmem:[%s4 + $0x10] sm:$0xf]
    %v339 = vld [vmem:[%s4 + $0x14] sm:$0xf]
    %v340 = vld [vmem:[%s4 + $0x18] sm:$0xf]
    %v341 = vld [vmem:[%s4 + $0x1c] sm:$0xf]
    %v342 = vld [vmem:[%s4 + $0x20] sm:$0xf]
    %v343 = vld [vmem:[%s4 + $0x24] sm:$0xf]
    %v344 = vld [vmem:[%s4 + $0x28] sm:$0xf]
    %v345 = vld [vmem:[%s4 + $0x2c] sm:$0xf]
    %v346 = vld [vmem:[%s4 + $0x30] sm:$0xf]
    %v347 = vld [vmem:[%s4 + $0x34] sm:$0xf]
    %v348 = vld [vmem:[%s4 + $0x38] sm:$0xf]
    %v349 = vld [vmem:[%s4 + $0x3c] sm:$0xf]
    %v366 = vunpack.c.l.b16 %v334
    %v367 = vunpack.c.l.b16 %v335
    %v368 = vunpack.c.l.b16 %v336
    %v369 = vunpack.c.l.b16 %v337
    %v370 = vunpack.c.l.b16 %v338
    %v371 = vunpack.c.l.b16 %v339
    %v372 = vunpack.c.l.b16 %v340
    %v373 = vunpack.c.l.b16 %v341
    %v374 = vunpack.c.l.b16 %v342
    %v375 = vunpack.c.l.b16 %v343
    %v376 = vunpack.c.l.b16 %v344
    %v377 = vunpack.c.l.b16 %v345
    %v378 = vunpack.c.l.b16 %v346
    %v379 = vunpack.c.l.b16 %v347
    %v380 = vunpack.c.l.b16 %v348
    %v381 = vunpack.c.l.b16 %v349
    %v382 = vpack.c.b16 %v367, %v366
    %v383 = vpack.c.b16 %v369, %v368
    %v384 = vpack.c.b16 %v371, %v370
    %v385 = vpack.c.b16 %v373, %v372
    %v386 = vpack.c.b16 %v375, %v374
    %v387 = vpack.c.b16 %v377, %v376
    %v388 = vpack.c.b16 %v379, %v378
    %v389 = vpack.c.b16 %v381, %v380
    %398 = vmatprep.subr.bf16.mxu0 0
    %399 = vmatpush1.bf16.msra.mxu0 %v382
    %400 = vmatprep.subr.bf16.mxu0 0
    %401 = vmatpush1.bf16.msra.mxu0 %v383
    %402 = vmatprep.subr.bf16.mxu0 0
    %403 = vmatpush1.bf16.msra.mxu0 %v384
    %404 = vmatprep.subr.bf16.mxu0 0
    %405 = vmatpush1.bf16.msra.mxu0 %v385
    %406 = vmatprep.subr.bf16.mxu0 0
    %407 = vmatpush1.bf16.msra.mxu0 %v386
    %408 = vmatprep.subr.bf16.mxu0 0
    %409 = vmatpush1.bf16.msra.mxu0 %v387
    %410 = vmatprep.subr.bf16.mxu0 0
    %411 = vmatpush1.bf16.msra.mxu0 %v388
    %412 = vmatprep.subr.bf16.mxu0 0
    %413 = vmatpush1.bf16.msra.mxu0 %v389
    %414 = vmatprep.subr.bf16.mxu0 0
    %415 = vmatpush1.bf16.msra.mxu0 0
    %416 = vmatprep.subr.bf16.mxu0 0
    %417 = vmatpush1.bf16.msra.mxu0 0
    %418 = vmatprep.subr.bf16.mxu0 0
    %419 = vmatpush1.bf16.msra.mxu0 0
    %420 = vmatprep.subr.bf16.mxu0 0
    %421 = vmatpush1.bf16.msra.mxu0 0
    %422 = vmatprep.subr.bf16.mxu0 0
    %423 = vmatpush1.bf16.msra.mxu0 0
    %424 = vmatprep.subr.bf16.mxu0 0
    %425 = vmatpush1.bf16.msra.mxu0 0
    %426 = vmatprep.subr.bf16.mxu0 0
    %427 = vmatpush1.bf16.msra.mxu0 0
    %428 = vmatprep.subr.bf16.mxu0 0
    %429 = vmatpush1.bf16.msra.mxu0 0
    %430 = vmatprep.mubr.bf16.mxu0 0
    %431 = vmatmul.mubr.bf16.gmra.mrb[0].mxu0 %v326
    %v432 = vpop.f32.mrb[0].mxu0
    %v433 = vadd.f32 0.0, %v432
    %v434 = vpop.f32.mrb[0].mxu0
    %v435 = vpop.f32.mrb[0].mxu0
    %v436 = vadd.f32 0.0, %v435
    %v437 = vpop.f32.mrb[0].mxu0
    %438 = vmatprep.mubr.bf16.mxu0 0
    %439 = vmatmul.mubr.bf16.gmra.mrb[0].mxu0 %v327
    %v440 = vpop.f32.mrb[0].mxu0
    %v441 = vadd.f32 0.0, %v440
    %v442 = vpop.f32.mrb[0].mxu0
    %v443 = vpop.f32.mrb[0].mxu0
    %v444 = vadd.f32 0.0, %v443
    %v445 = vpop.f32.mrb[0].mxu0
    %446 = vmatprep.mubr.bf16.mxu0 0
    %447 = vmatmul.mubr.bf16.gmra.mrb[0].mxu0 %v328
    %v448 = vpop.f32.mrb[0].mxu0
    %v449 = vadd.f32 0.0, %v448
    %v450 = vpop.f32.mrb[0].mxu0
    %v451 = vpop.f32.mrb[0].mxu0
    %v452 = vadd.f32 0.0, %v451
    %v453 = vpop.f32.mrb[0].mxu0
    %454 = vmatprep.mubr.bf16.mxu0 0
    %455 = vmatmul.mubr.bf16.gmra.mrb[0].mxu0 %v329
    %v456 = vpop.f32.mrb[0].mxu0
    %v457 = vadd.f32 0.0, %v456
    %v458 = vpop.f32.mrb[0].mxu0
    %v459 = vpop.f32.mrb[0].mxu0
    %v460 = vadd.f32 0.0, %v459
    %v461 = vpop.f32.mrb[0].mxu0
    %462 = vmatprep.mubr.bf16.mxu0 0
    %463 = vmatmul.mubr.bf16.gmra.mrb[0].mxu0 %v330
    %v464 = vpop.f32.mrb[0].mxu0
    %v465 = vadd.f32 0.0, %v464
    %v466 = vpop.f32.mrb[0].mxu0
    %v467 = vpop.f32.mrb[0].mxu0
    %v468 = vadd.f32 0.0, %v467
    %v469 = vpop.f32.mrb[0].mxu0
    %470 = vmatprep.mubr.bf16.mxu0 0
    %471 = vmatmul.mubr.bf16.gmra.mrb[0].mxu0 %v331
    %v472 = vpop.f32.mrb[0].mxu0
    %v473 = vadd.f32 0.0, %v472
    %v474 = vpop.f32.mrb[0].mxu0
    %v475 = vpop.f32.mrb[0].mxu0
    %v476 = vadd.f32 0.0, %v475
    %v477 = vpop.f32.mrb[0].mxu0
    %478 = vmatprep.mubr.bf16.mxu0 0
    %479 = vmatmul.mubr.bf16.gmra.mrb[0].mxu0 %v332
    %v480 = vpop.f32.mrb[0].mxu0
    %v481 = vadd.f32 0.0, %v480
    %v482 = vpop.f32.mrb[0].mxu0
    %v483 = vpop.f32.mrb[0].mxu0
    %v484 = vadd.f32 0.0, %v483
    %v485 = vpop.f32.mrb[0].mxu0
    %486 = vmatprep.mubr.bf16.mxu0 0
    %487 = vmatmul.mubr.bf16.gmra.mrb[0].mxu0 %v333
    %v488 = vpop.f32.mrb[0].mxu0
    %v489 = vadd.f32 0.0, %v488
    %v490 = vpop.f32.mrb[0].mxu0
    %v491 = vpop.f32.mrb[0].mxu0
    %v492 = vadd.f32 0.0, %v491
    %v493 = vpop.f32.mrb[0].mxu0
    %494 = vdwg.mxu0
    %v495 = vadd.f32 %v433, %v436
    %v496 = vadd.f32 %v495, %v441
    %v497 = vadd.f32 %v496, %v444
    %v498 = vadd.f32 %v497, %v449
    %v499 = vadd.f32 %v498, %v452
    %v500 = vadd.f32 %v499, %v457
    %v501 = vadd.f32 %v500, %v460
    %v502 = vadd.f32 %v501, %v465
    %v503 = vadd.f32 %v502, %v468
    %v504 = vadd.f32 %v503, %v473
    %v505 = vadd.f32 %v504, %v476
    %v506 = vadd.f32 %v505, %v481
    %v507 = vadd.f32 %v506, %v484
    %v508 = vadd.f32 %v507, %v489
    %v509 = vadd.f32 %v508, %v492
    %v510 = vrot.slane %v509, 4
    %v511 = vadd.f32 %v509, %v510
    %v512 = vrot.slane %v511, 2
    %v513 = vadd.f32 %v511, %v512
    %v514 = vrot.slane %v513, 1
    %v515 = vadd.f32 %v513, %v514
    %v516 = vmul.f32 %v515, 0.0078125
    %v517 = vmul.f32 %v433, %v433
    %v518 = vmul.f32 %v436, %v436
    %v519 = vmul.f32 %v441, %v441
    %v520 = vmul.f32 %v444, %v444
    %v521 = vmul.f32 %v449, %v449
    %v522 = vmul.f32 %v452, %v452
    %v523 = vmul.f32 %v457, %v457
    %v524 = vmul.f32 %v460, %v460
    %v525 = vmul.f32 %v465, %v465
    %v526 = vmul.f32 %v468, %v468
    %v527 = vmul.f32 %v473, %v473
    %v528 = vmul.f32 %v476, %v476
    %v529 = vmul.f32 %v481, %v481
    %v530 = vmul.f32 %v484, %v484
    %v531 = vmul.f32 %v489, %v489
    %v532 = vmul.f32 %v492, %v492
    %v533 = vadd.f32 %v517, %v518
    %v534 = vadd.f32 %v533, %v519
    %v535 = vadd.f32 %v534, %v520
    %v536 = vadd.f32 %v535, %v521
    %v537 = vadd.f32 %v536, %v522
    %v538 = vadd.f32 %v537, %v523
    %v539 = vadd.f32 %v538, %v524
    %v540 = vadd.f32 %v539, %v525
    %v541 = vadd.f32 %v540, %v526
    %v542 = vadd.f32 %v541, %v527
    %v543 = vadd.f32 %v542, %v528
    %v544 = vadd.f32 %v543, %v529
    %v545 = vadd.f32 %v544, %v530
    %v546 = vadd.f32 %v545, %v531
    %v547 = vadd.f32 %v546, %v532
    %v548 = vrot.slane %v547, 4
    %v549 = vadd.f32 %v547, %v548
    %v550 = vrot.slane %v549, 2
    %v551 = vadd.f32 %v549, %v550
    %v552 = vrot.slane %v551, 1
    %v553 = vadd.f32 %v551, %v552
    %v554 = vmul.f32 %v553, 0.0078125
    %v555 = vmul.f32 %v516, %v516
    %v556 = vsub.f32 %v554, %v555
    %v557 = vadd.f32 %v556, 1e-05
    %v558 = vrsqrt.pop %v557
    %v559 = vld [vmem:[%s5] sm:$0x1]
    %v560 = vmul.f32 %v558, %v559
    %v561 = vld [vmem:[%s6] sm:$0x1]
    %v562 = vmul.f32 %v516, %v560
    %v563 = vsub.f32 %v561, %v562
    %v564 = vlaneseq
    %v565 = vshrl.u32 %v564, 7
    %v566 = vsub.s32 0, %v565
    %v567 = vrot.slane %v560, %v566
    %v568 = vmul.f32 %v433, %v567
    %v569 = vmul.f32 %v436, %v567
    %v570 = vmul.f32 %v441, %v567
    %v571 = vmul.f32 %v444, %v567
    %v572 = vmul.f32 %v449, %v567
    %v573 = vmul.f32 %v452, %v567
    %v574 = vmul.f32 %v457, %v567
    %v575 = vmul.f32 %v460, %v567
    %v576 = vmul.f32 %v465, %v567
    %v577 = vmul.f32 %v468, %v567
    %v578 = vmul.f32 %v473, %v567
    %v579 = vmul.f32 %v476, %v567
    %v580 = vmul.f32 %v481, %v567
    %v581 = vmul.f32 %v484, %v567
    %v582 = vmul.f32 %v489, %v567
    %v583 = vmul.f32 %v492, %v567
    %v585 = vlaneseq
    %v586 = vshrl.u32 %v585, 7
    %v587 = vsub.s32 0, %v586
    %v588 = vrot.slane %v563, %v587
    %v590 = vadd.f32 %v568, %v588
    %v591 = vadd.f32 %v569, %v588
    %v592 = vadd.f32 %v570, %v588
    %v593 = vadd.f32 %v571, %v588
    %v594 = vadd.f32 %v572, %v588
    %v595 = vadd.f32 %v573, %v588
    %v596 = vadd.f32 %v574, %v588
    %v597 = vadd.f32 %v575, %v588
    %v598 = vadd.f32 %v576, %v588
    %v599 = vadd.f32 %v577, %v588
    %v600 = vadd.f32 %v578, %v588
    %v601 = vadd.f32 %v579, %v588
    %v602 = vadd.f32 %v580, %v588
    %v603 = vadd.f32 %v581, %v588
    %v604 = vadd.f32 %v582, %v588
    %v605 = vadd.f32 %v583, %v588
    %v606 = vmax.f32 %v590, 0.0
    %v607 = vmax.f32 %v591, 0.0
    %v608 = vmax.f32 %v592, 0.0
    %v609 = vmax.f32 %v593, 0.0
    %v610 = vmax.f32 %v594, 0.0
    %v611 = vmax.f32 %v595, 0.0
    %v612 = vmax.f32 %v596, 0.0
    %v613 = vmax.f32 %v597, 0.0
    %v614 = vmax.f32 %v598, 0.0
    %v615 = vmax.f32 %v599, 0.0
    %v616 = vmax.f32 %v600, 0.0
    %v617 = vmax.f32 %v601, 0.0
    %v618 = vmax.f32 %v602, 0.0
    %v619 = vmax.f32 %v603, 0.0
    %v620 = vmax.f32 %v604, 0.0
    %v621 = vmax.f32 %v605, 0.0
    %v622 = vpack.c.bf16 %v607, %v606
    %v623 = vpack.c.bf16 %v609, %v608
    %v624 = vpack.c.bf16 %v611, %v610
    %v625 = vpack.c.bf16 %v613, %v612
    %v626 = vpack.c.bf16 %v615, %v614
    %v627 = vpack.c.bf16 %v617, %v616
    %v628 = vpack.c.bf16 %v619, %v618
    %v629 = vpack.c.bf16 %v621, %v620
    %v630 = vld [vmem:[%s7] sm:$0xf]
    %v631 = vld [vmem:[%s7 + $0x4] sm:$0xf]
    %v632 = vld [vmem:[%s7 + $0x8] sm:$0xf]
    %v633 = vld [vmem:[%s7 + $0xc] sm:$0xf]
    %v634 = vld [vmem:[%s7 + $0x10] sm:$0xf]
    %v635 = vld [vmem:[%s7 + $0x14] sm:$0xf]
    %v636 = vld [vmem:[%s7 + $0x18] sm:$0xf]
    %v637 = vld [vmem:[%s7 + $0x1c] sm:$0xf]
    %v638 = vld [vmem:[%s7 + $0x20] sm:$0xf]
    %v639 = vld [vmem:[%s7 + $0x24] sm:$0xf]
    %v640 = vld [vmem:[%s7 + $0x28] sm:$0xf]
    %v641 = vld [vmem:[%s7 + $0x2c] sm:$0xf]
    %v642 = vld [vmem:[%s7 + $0x30] sm:$0xf]
    %v643 = vld [vmem:[%s7 + $0x34] sm:$0xf]
    %v644 = vld [vmem:[%s7 + $0x38] sm:$0xf]
    %v645 = vld [vmem:[%s7 + $0x3c] sm:$0xf]
    %v662 = vunpack.c.l.b16 %v630
    %v663 = vunpack.c.l.b16 %v631
    %v664 = vunpack.c.l.b16 %v632
    %v665 = vunpack.c.l.b16 %v633
    %v666 = vunpack.c.l.b16 %v634
    %v667 = vunpack.c.l.b16 %v635
    %v668 = vunpack.c.l.b16 %v636
    %v669 = vunpack.c.l.b16 %v637
    %v670 = vunpack.c.l.b16 %v638
    %v671 = vunpack.c.l.b16 %v639
    %v672 = vunpack.c.l.b16 %v640
    %v673 = vunpack.c.l.b16 %v641
    %v674 = vunpack.c.l.b16 %v642
    %v675 = vunpack.c.l.b16 %v643
    %v676 = vunpack.c.l.b16 %v644
    %v677 = vunpack.c.l.b16 %v645
    %v678 = vpack.c.b16 %v663, %v662
    %v679 = vpack.c.b16 %v665, %v664
    %v680 = vpack.c.b16 %v667, %v666
    %v681 = vpack.c.b16 %v669, %v668
    %v682 = vpack.c.b16 %v671, %v670
    %v683 = vpack.c.b16 %v673, %v672
    %v684 = vpack.c.b16 %v675, %v674
    %v685 = vpack.c.b16 %v677, %v676
    %694 = vmatprep.subr.bf16.mxu0 0
    %695 = vmatpush1.bf16.msra.mxu0 %v678
    %696 = vmatprep.subr.bf16.mxu0 0
    %697 = vmatpush1.bf16.msra.mxu0 %v679
    %698 = vmatprep.subr.bf16.mxu0 0
    %699 = vmatpush1.bf16.msra.mxu0 %v680
    %700 = vmatprep.subr.bf16.mxu0 0
    %701 = vmatpush1.bf16.msra.mxu0 %v681
    %702 = vmatprep.subr.bf16.mxu0 0
    %703 = vmatpush1.bf16.msra.mxu0 %v682
    %704 = vmatprep.subr.bf16.mxu0 0
    %705 = vmatpush1.bf16.msra.mxu0 %v683
    %706 = vmatprep.subr.bf16.mxu0 0
    %707 = vmatpush1.bf16.msra.mxu0 %v684
    %708 = vmatprep.subr.bf16.mxu0 0
    %709 = vmatpush1.bf16.msra.mxu0 %v685
    %710 = vmatprep.subr.bf16.mxu0 0
    %711 = vmatpush1.bf16.msra.mxu0 0
    %712 = vmatprep.subr.bf16.mxu0 0
    %713 = vmatpush1.bf16.msra.mxu0 0
    %714 = vmatprep.subr.bf16.mxu0 0
    %715 = vmatpush1.bf16.msra.mxu0 0
    %716 = vmatprep.subr.bf16.mxu0 0
    %717 = vmatpush1.bf16.msra.mxu0 0
    %718 = vmatprep.subr.bf16.mxu0 0
    %719 = vmatpush1.bf16.msra.mxu0 0
    %720 = vmatprep.subr.bf16.mxu0 0
    %721 = vmatpush1.bf16.msra.mxu0 0
    %722 = vmatprep.subr.bf16.mxu0 0
    %723 = vmatpush1.bf16.msra.mxu0 0
    %724 = vmatprep.subr.bf16.mxu0 0
    %725 = vmatpush1.bf16.msra.mxu0 0
    %726 = vmatprep.mubr.bf16.mxu0 0
    %727 = vmatmul.mubr.bf16.gmra.mrb[0].mxu0 %v622
    %v728 = vpop.f32.mrb[0].mxu0
    %v729 = vadd.f32 0.0, %v728
    %v730 = vpop.f32.mrb[0].mxu0
    %v731 = vpop.f32.mrb[0].mxu0
    %v732 = vadd.f32 0.0, %v731
    %v733 = vpop.f32.mrb[0].mxu0
    %734 = vmatprep.mubr.bf16.mxu0 0
    %735 = vmatmul.mubr.bf16.gmra.mrb[0].mxu0 %v623
    %v736 = vpop.f32.mrb[0].mxu0
    %v737 = vadd.f32 0.0, %v736
    %v738 = vpop.f32.mrb[0].mxu0
    %v739 = vpop.f32.mrb[0].mxu0
    %v740 = vadd.f32 0.0, %v739
    %v741 = vpop.f32.mrb[0].mxu0
    %742 = vmatprep.mubr.bf16.mxu0 0
    %743 = vmatmul.mubr.bf16.gmra.mrb[0].mxu0 %v624
    %v744 = vpop.f32.mrb[0].mxu0
    %v745 = vadd.f32 0.0, %v744
    %v746 = vpop.f32.mrb[0].mxu0
    %v747 = vpop.f32.mrb[0].mxu0
    %v748 = vadd.f32 0.0, %v747
    %v749 = vpop.f32.mrb[0].mxu0
    %750 = vmatprep.mubr.bf16.mxu0 0
    %751 = vmatmul.mubr.bf16.gmra.mrb[0].mxu0 %v625
    %v752 = vpop.f32.mrb[0].mxu0
    %v753 = vadd.f32 0.0, %v752
    %v754 = vpop.f32.mrb[0].mxu0
    %v755 = vpop.f32.mrb[0].mxu0
    %v756 = vadd.f32 0.0, %v755
    %v757 = vpop.f32.mrb[0].mxu0
    %758 = vmatprep.mubr.bf16.mxu0 0
    %759 = vmatmul.mubr.bf16.gmra.mrb[0].mxu0 %v626
    %v760 = vpop.f32.mrb[0].mxu0
    %v761 = vadd.f32 0.0, %v760
    %v762 = vpop.f32.mrb[0].mxu0
    %v763 = vpop.f32.mrb[0].mxu0
    %v764 = vadd.f32 0.0, %v763
    %v765 = vpop.f32.mrb[0].mxu0
    %766 = vmatprep.mubr.bf16.mxu0 0
    %767 = vmatmul.mubr.bf16.gmra.mrb[0].mxu0 %v627
    %v768 = vpop.f32.mrb[0].mxu0
    %v769 = vadd.f32 0.0, %v768
    %v770 = vpop.f32.mrb[0].mxu0
    %v771 = vpop.f32.mrb[0].mxu0
    %v772 = vadd.f32 0.0, %v771
    %v773 = vpop.f32.mrb[0].mxu0
    %774 = vmatprep.mubr.bf16.mxu0 0
    %775 = vmatmul.mubr.bf16.gmra.mrb[0].mxu0 %v628
    %v776 = vpop.f32.mrb[0].mxu0
    %v777 = vadd.f32 0.0, %v776
    %v778 = vpop.f32.mrb[0].mxu0
    %v779 = vpop.f32.mrb[0].mxu0
    %v780 = vadd.f32 0.0, %v779
    %v781 = vpop.f32.mrb[0].mxu0
    %782 = vmatprep.mubr.bf16.mxu0 0
    %783 = vmatmul.mubr.bf16.gmra.mrb[0].mxu0 %v629
    %v784 = vpop.f32.mrb[0].mxu0
    %v785 = vadd.f32 0.0, %v784
    %v786 = vpop.f32.mrb[0].mxu0
    %v787 = vpop.f32.mrb[0].mxu0
    %v788 = vadd.f32 0.0, %v787
    %v789 = vpop.f32.mrb[0].mxu0
    %790 = vdwg.mxu0
    %v791 = vadd.f32 %v729, %v732
    %v792 = vadd.f32 %v791, %v737
    %v793 = vadd.f32 %v792, %v740
    %v794 = vadd.f32 %v793, %v745
    %v795 = vadd.f32 %v794, %v748
    %v796 = vadd.f32 %v795, %v753
    %v797 = vadd.f32 %v796, %v756
    %v798 = vadd.f32 %v797, %v761
    %v799 = vadd.f32 %v798, %v764
    %v800 = vadd.f32 %v799, %v769
    %v801 = vadd.f32 %v800, %v772
    %v802 = vadd.f32 %v801, %v777
    %v803 = vadd.f32 %v802, %v780
    %v804 = vadd.f32 %v803, %v785
    %v805 = vadd.f32 %v804, %v788
    %v806 = vrot.slane %v805, 4
    %v807 = vadd.f32 %v805, %v806
    %v808 = vrot.slane %v807, 2
    %v809 = vadd.f32 %v807, %v808
    %v810 = vrot.slane %v809, 1
    %v811 = vadd.f32 %v809, %v810
    %v812 = vmul.f32 %v811, 0.0078125
    %v813 = vmul.f32 %v729, %v729
    %v814 = vmul.f32 %v732, %v732
    %v815 = vmul.f32 %v737, %v737
    %v816 = vmul.f32 %v740, %v740
    %v817 = vmul.f32 %v745, %v745
    %v818 = vmul.f32 %v748, %v748
    %v819 = vmul.f32 %v753, %v753
    %v820 = vmul.f32 %v756, %v756
    %v821 = vmul.f32 %v761, %v761
    %v822 = vmul.f32 %v764, %v764
    %v823 = vmul.f32 %v769, %v769
    %v824 = vmul.f32 %v772, %v772
    %v825 = vmul.f32 %v777, %v777
    %v826 = vmul.f32 %v780, %v780
    %v827 = vmul.f32 %v785, %v785
    %v828 = vmul.f32 %v788, %v788
    %v829 = vadd.f32 %v813, %v814
    %v830 = vadd.f32 %v829, %v815
    %v831 = vadd.f32 %v830, %v816
    %v832 = vadd.f32 %v831, %v817
    %v833 = vadd.f32 %v832, %v818
    %v834 = vadd.f32 %v833, %v819
    %v835 = vadd.f32 %v834, %v820
    %v836 = vadd.f32 %v835, %v821
    %v837 = vadd.f32 %v836, %v822
    %v838 = vadd.f32 %v837, %v823
    %v839 = vadd.f32 %v838, %v824
    %v840 = vadd.f32 %v839, %v825
    %v841 = vadd.f32 %v840, %v826
    %v842 = vadd.f32 %v841, %v827
    %v843 = vadd.f32 %v842, %v828
    %v844 = vrot.slane %v843, 4
    %v845 = vadd.f32 %v843, %v844
    %v846 = vrot.slane %v845, 2
    %v847 = vadd.f32 %v845, %v846
    %v848 = vrot.slane %v847, 1
    %v849 = vadd.f32 %v847, %v848
    %v850 = vmul.f32 %v849, 0.0078125
    %v851 = vmul.f32 %v812, %v812
    %v852 = vsub.f32 %v850, %v851
    %v853 = vadd.f32 %v852, 1e-05
    %v854 = vrsqrt.pop %v853
    %v855 = vld [vmem:[%s8] sm:$0x1]
    %v856 = vmul.f32 %v854, %v855
    %v857 = vld [vmem:[%s9] sm:$0x1]
    %v858 = vmul.f32 %v812, %v856
    %v859 = vsub.f32 %v857, %v858
    %v860 = vlaneseq
    %v861 = vshrl.u32 %v860, 7
    %v862 = vsub.s32 0, %v861
    %v863 = vrot.slane %v856, %v862
    %v864 = vmul.f32 %v729, %v863
    %v865 = vmul.f32 %v732, %v863
    %v866 = vmul.f32 %v737, %v863
    %v867 = vmul.f32 %v740, %v863
    %v868 = vmul.f32 %v745, %v863
    %v869 = vmul.f32 %v748, %v863
    %v870 = vmul.f32 %v753, %v863
    %v871 = vmul.f32 %v756, %v863
    %v872 = vmul.f32 %v761, %v863
    %v873 = vmul.f32 %v764, %v863
    %v874 = vmul.f32 %v769, %v863
    %v875 = vmul.f32 %v772, %v863
    %v876 = vmul.f32 %v777, %v863
    %v877 = vmul.f32 %v780, %v863
    %v878 = vmul.f32 %v785, %v863
    %v879 = vmul.f32 %v788, %v863
    %v881 = vlaneseq
    %v882 = vshrl.u32 %v881, 7
    %v883 = vsub.s32 0, %v882
    %v884 = vrot.slane %v859, %v883
    %v886 = vadd.f32 %v864, %v884
    %v887 = vadd.f32 %v865, %v884
    %v888 = vadd.f32 %v866, %v884
    %v889 = vadd.f32 %v867, %v884
    %v890 = vadd.f32 %v868, %v884
    %v891 = vadd.f32 %v869, %v884
    %v892 = vadd.f32 %v870, %v884
    %v893 = vadd.f32 %v871, %v884
    %v894 = vadd.f32 %v872, %v884
    %v895 = vadd.f32 %v873, %v884
    %v896 = vadd.f32 %v874, %v884
    %v897 = vadd.f32 %v875, %v884
    %v898 = vadd.f32 %v876, %v884
    %v899 = vadd.f32 %v877, %v884
    %v900 = vadd.f32 %v878, %v884
    %v901 = vadd.f32 %v879, %v884
    %v902 = vmax.f32 %v886, 0.0
    %v903 = vmax.f32 %v887, 0.0
    %v904 = vmax.f32 %v888, 0.0
    %v905 = vmax.f32 %v889, 0.0
    %v906 = vmax.f32 %v890, 0.0
    %v907 = vmax.f32 %v891, 0.0
    %v908 = vmax.f32 %v892, 0.0
    %v909 = vmax.f32 %v893, 0.0
    %v910 = vmax.f32 %v894, 0.0
    %v911 = vmax.f32 %v895, 0.0
    %v912 = vmax.f32 %v896, 0.0
    %v913 = vmax.f32 %v897, 0.0
    %v914 = vmax.f32 %v898, 0.0
    %v915 = vmax.f32 %v899, 0.0
    %v916 = vmax.f32 %v900, 0.0
    %v917 = vmax.f32 %v901, 0.0
    %918 = vst [vmem:[#allocation2] sm:$0xff] %v902
    %919 = vst [vmem:[#allocation2 + $0x8] sm:$0xff] %v903
    %920 = vst [vmem:[#allocation2 + $0x10] sm:$0xff] %v904
    %921 = vst [vmem:[#allocation2 + $0x18] sm:$0xff] %v905
    %922 = vst [vmem:[#allocation2 + $0x20] sm:$0xff] %v906
    %923 = vst [vmem:[#allocation2 + $0x28] sm:$0xff] %v907
    %924 = vst [vmem:[#allocation2 + $0x30] sm:$0xff] %v908
    %925 = vst [vmem:[#allocation2 + $0x38] sm:$0xff] %v909
    %926 = vst [vmem:[#allocation2 + $0x40] sm:$0xff] %v910
    %927 = vst [vmem:[#allocation2 + $0x48] sm:$0xff] %v911
    %928 = vst [vmem:[#allocation2 + $0x50] sm:$0xff] %v912
    %929 = vst [vmem:[#allocation2 + $0x58] sm:$0xff] %v913
    %930 = vst [vmem:[#allocation2 + $0x60] sm:$0xff] %v914
    %931 = vst [vmem:[#allocation2 + $0x68] sm:$0xff] %v915
    %932 = vst [vmem:[#allocation2 + $0x70] sm:$0xff] %v916
    %933 = vst [vmem:[#allocation2 + $0x78] sm:$0xff] %v917
    // Predicated region
    $region42: #{tpu_custom_call.1} parent=1 // pred_check
      _
    $region43: #{tpu_custom_call.1} parent=1 // pred_check_branch
      %935 = sbr.rel (0) target = $region45
    $region44: #{tpu_custom_call.1} parent=1 // pred_region
      %s937 = ssub.s32 2048, 2048
      %938 = vsyncadd [#allocation3], %s937
      %s939 = sshll.u32 [#allocation2], 4
      %s940 = int_to_ptr.vmem [resolvable:$true] %s939
      %945 = dma.vmem_to_hbm [thread:$0]  %s940, 2048, %s10, [#allocation3], 128, 128, 8
    $region45: #{tpu_custom_call.1} parent=1 // pred_fallthru
      _
    // Predicated region
    $region46: #{tpu_custom_call.1} parent=1 // pred_check
      _
    $region47: #{tpu_custom_call.1} parent=1 // pred_check_branch
      %947 = sbr.rel (0) target = $region49
    $region48: #{tpu_custom_call.1} parent=1 // pred_region
      %948 = dma.done [#allocation3], 2048
    $region49: #{tpu_custom_call.1} parent=1 // pred_fallthru
      _
    %949 = vsyncpa [#allocation3], 1

</llo_original>
